<compile_context>
chip_gen: v6e
topology: v6e:2x2x1
jax: 0.10.0
libtpu: 0.0.40
codegen_flags: <defaults>
</compile_context>

<pallas_src>
import jax
import jax.numpy as jnp
import numpy as np
from jax.experimental import pallas as pl
from jax.experimental.pallas import tpu as pltpu

LANE = 128


# ----------------------------------------------------------------------------
# Per-chip sizing helpers
# ----------------------------------------------------------------------------
def _round_up(x, m):
    return ((x + m - 1) // m) * m


def _tpu_budget():
    """Return (vmem_limit_bytes, max HW tile in lanes) for this generation."""
    try:
        vmem = pltpu.get_tpu_info().vmem_capacity_bytes
    except Exception:
        vmem = 64 << 20                       # conservative default (v7x-like)
    if vmem >= (100 << 20):                   # v5e / v6e: 128 MiB physical VMEM
        return 96 << 20, 2048
    return 48 << 20, 1024                     # v7x: 64 MiB per TensorCore


def _choose_hw_tile(hw, t_max):
    """(tile, padded_hw): tile is a multiple of 128 (or == hw when it fits in
    one block) and padded_hw % tile == 0. Prefers a divisor tile so the
    wrapper almost never has to pad the HW axis."""
    if hw <= t_max:
        return hw, hw                          # one block == full extent, no pad
    n_lane = _round_up(hw, LANE) // LANE
    for k in range(t_max // LANE, 3, -1):      # only accept tiles >= 512 lanes
        if n_lane % k == 0:
            return k * LANE, n_lane * LANE
    return t_max, _round_up(hw, t_max)         # fallback: pad up to t_max


def _const_spec(shape):
    """BlockSpec for an operand identical on every grid step: constant
    index_map + single buffering (double-buffering constants wastes VMEM)."""
    idx = lambda *_: (0,) * len(shape)
    try:
        return pl.BlockSpec(shape, idx, pipeline_mode=pl.Buffered(1))
    except (TypeError, ValueError):            # older JAX: default buffering
        return pl.BlockSpec(shape, idx)


# ----------------------------------------------------------------------------
# Branch kernel: 1x1 Conv + (folded) BN + SiLU at native resolution
# ----------------------------------------------------------------------------
def _branch_kernel(x_ref, w_ref, b_ref, o_ref):
    # x_ref: (1, Cin, T) bf16, w_ref: (C, Cin) bf16, b_ref: (C, 1) f32
    y = jnp.dot(w_ref[...], x_ref[0], preferred_element_type=jnp.float32)
    y = y + b_ref[...]
    o_ref[0] = (y * jax.nn.sigmoid(y)).astype(o_ref.dtype)   # SiLU in f32


def conv1x1_bn_silu(x_flat, w, b, *, t_max, vmem_limit, out_dtype=jnp.bfloat16):
    """x_flat: (N, Cin, HW) compute-dtype pixels-in-lanes. Returns (N, C, HW)."""
    N, Cin, HW = x_flat.shape
    C = w.shape[0]
    T, HWp = _choose_hw_tile(HW, t_max)
    if HWp != HW:
        x_flat = jnp.pad(x_flat, ((0, 0), (0, 0), (0, HWp - HW)))
    num_t = HWp // T

    out = pl.pallas_call(
        _branch_kernel,
        out_shape=jax.ShapeDtypeStruct((N, C, HWp), out_dtype),
        grid_spec=pl.GridSpec(
            grid=(num_t, N),
            in_specs=[
                pl.BlockSpec((1, Cin, T), lambda t, n: (n, 0, t)),
                _const_spec((C, Cin)),
                _const_spec((C, 1)),
            ],
            out_specs=pl.BlockSpec((1, C, T), lambda t, n: (n, 0, t)),
        ),
        compiler_params=pltpu.CompilerParams(
            dimension_semantics=("parallel", "parallel"),
            vmem_limit_bytes=vmem_limit),
    )(x_flat, w, b)
    return out[:, :, :HW]


# ----------------------------------------------------------------------------
# Main kernel: conv0+BN+SiLU on p3, folded Conv3d+BN3d, LeakyReLU, max(3)
# ----------------------------------------------------------------------------
def _main_tail(y3, q4_ref, q5_ref, w3_ref, b3_ref, o_ref):
    w3 = w3_ref[...]
    # Three dense (C,C)@(C,T) dots + running max. (The block-diagonal single
    # dot is only worthwhile when 3C fits one MXU tile; at realistic C it
    # costs 3x FLOPs, and at tiny C the kernel is mem-bound anyway.)
    z = jnp.dot(w3, y3, preferred_element_type=jnp.float32)
    z = jnp.maximum(z, jnp.dot(w3, q4_ref[0], preferred_element_type=jnp.float32))
    z = jnp.maximum(z, jnp.dot(w3, q5_ref[0], preferred_element_type=jnp.float32))
    # bias + LeakyReLU hoisted outside the max (monotone / shift-invariant):
    # max_s LReLU(w3@y_s + b3) == LReLU(max_s(w3@y_s) + b3)
    z = z + b3_ref[...]
    o_ref[0] = jnp.maximum(z, 0.1 * z).astype(o_ref.dtype)   # LeakyReLU(0.1)


def _make_main_kernel(has_conv0):
    if has_conv0:
        def kernel(p3_ref, q4_ref, q5_ref, w0_ref, b0_ref, w3_ref, b3_ref, o_ref):
            y3 = jnp.dot(w0_ref[...], p3_ref[0],
                         preferred_element_type=jnp.float32) + b0_ref[...]
            y3 = (y3 * jax.nn.sigmoid(y3)).astype(q4_ref.dtype)   # SiLU, -> bf16
            _main_tail(y3, q4_ref, q5_ref, w3_ref, b3_ref, o_ref)
    else:
        def kernel(p3_ref, q4_ref, q5_ref, w3_ref, b3_ref, o_ref):
            _main_tail(p3_ref[0], q4_ref, q5_ref, w3_ref, b3_ref, o_ref)
    return kernel


def scalseq_main_pallas(p3f, q4f, q5f, params, *, has_conv0, t_max, vmem_limit,
                        out_dtype=jnp.bfloat16):
    """p3f: (N, C0, HW); q4f/q5f: (N, C, HW) branch outputs already upsampled."""
    N, C0, HW = p3f.shape
    C = params["w3"].shape[0]
    T, HWp = _choose_hw_tile(HW, t_max)
    if HWp != HW:
        pad = ((0, 0), (0, 0), (0, HWp - HW))
        p3f, q4f, q5f = (jnp.pad(a, pad) for a in (p3f, q4f, q5f))
    num_t = HWp // T

    pix = lambda c: pl.BlockSpec((1, c, T), lambda t, n: (n, 0, t))
    in_specs = [pix(C0), pix(C), pix(C)]
    operands = [p3f, q4f, q5f]
    if has_conv0:
        in_specs += [_const_spec((C, C0)), _const_spec((C, 1))]
        operands += [params["w0"], params["b0"]]
    in_specs += [_const_spec((C, C)), _const_spec((C, 1))]
    operands += [params["w3"], params["b3"]]

    out = pl.pallas_call(
        _make_main_kernel(has_conv0),
        out_shape=jax.ShapeDtypeStruct((N, C, HWp), out_dtype),
        grid_spec=pl.GridSpec(
            grid=(num_t, N),          # HW tiles lead so a v7x megacore can
            in_specs=in_specs,        # split them even when N == 1
            out_specs=pl.BlockSpec((1, C, T), lambda t, n: (n, 0, t)),
        ),
        compiler_params=pltpu.CompilerParams(
            dimension_semantics=("parallel", "parallel"),
            vmem_limit_bytes=vmem_limit),
    )(*operands)
    return out[:, :, :HW]


# ----------------------------------------------------------------------------
# Glue: nearest upsample, parameter construction / BN folding, full forward
# ----------------------------------------------------------------------------
def nearest_upsample_nchw(x, H, W):
    """F.interpolate(..., mode='nearest') semantics: src = floor(dst*in/out)."""
    n, c, h, w = x.shape
    ih = (jnp.arange(H) * h) // H
    iw = (jnp.arange(W) * w) // W
    return x[:, :, ih, :][:, :, :, iw]


def make_raw_params(key, inc, channel, eps=1e-5):
    """Deterministic synthetic parameters matching the PyTorch module shapes."""
    ks = jax.random.split(key, 32)
    k = iter(ks)
    raw = {"eps": eps}

    def conv_bn(prefix, cin):
        raw[prefix + "_w"] = 0.1 * jax.random.normal(next(k), (channel, cin), jnp.float32)
        raw[prefix + "_g"] = jax.random.uniform(next(k), (channel,), jnp.float32, 0.5, 1.5)
        raw[prefix + "_b"] = 0.1 * jax.random.normal(next(k), (channel,), jnp.float32)
        raw[prefix + "_m"] = 0.1 * jax.random.normal(next(k), (channel,), jnp.float32)
        raw[prefix + "_v"] = jax.random.uniform(next(k), (channel,), jnp.float32, 0.5, 1.5)

    if channel != inc[0]:
        conv_bn("c0", inc[0])       # conv0 exists iff channel != inc[0]
    conv_bn("c1", inc[1])
    conv_bn("c2", inc[2])

    # Conv3d(channel, channel, (1,1,1)) has a bias; BN3d after it.
    raw["c3_w"] = 0.1 * jax.random.normal(next(k), (channel, channel), jnp.float32)
    raw["c3_bias"] = 0.1 * jax.random.normal(next(k), (channel,), jnp.float32)
    raw["c3_g"] = jax.random.uniform(next(k), (channel,), jnp.float32, 0.5, 1.5)
    raw["c3_b"] = 0.1 * jax.random.normal(next(k), (channel,), jnp.float32)
    raw["c3_m"] = 0.1 * jax.random.normal(next(k), (channel,), jnp.float32)
    raw["c3_v"] = jax.random.uniform(next(k), (channel,), jnp.float32, 0.5, 1.5)
    return raw


def fold_params(raw, compute_dtype=jnp.bfloat16):
    """Fold Conv+BN / Conv3d+BN3d into per-branch (weight, bias) pairs.
    Weights are cast to the MXU compute dtype; biases stay f32."""
    eps = raw["eps"]

    def fold(prefix, conv_bias=None):
        s = raw[prefix + "_g"] / jnp.sqrt(raw[prefix + "_v"] + eps)      # (C,)
        w = (s[:, None] * raw[prefix + "_w"]).astype(compute_dtype)      # (C,Cin)
        if conv_bias is None:
            b = raw[prefix + "_b"] - s * raw[prefix + "_m"]
        else:
            b = s * (conv_bias - raw[prefix + "_m"]) + raw[prefix + "_b"]
        return w, b[:, None].astype(jnp.float32)                         # (C,1)

    params = {}
    if "c0_w" in raw:
        params["w0"], params["b0"] = fold("c0")
    params["w1"], params["b1"] = fold("c1")
    params["w2"], params["b2"] = fold("c2")
    params["w3"], params["b3"] = fold("c3", conv_bias=raw["c3_bias"])
    return params


def scalseq_forward(x_list, raw, compute_dtype=jnp.bfloat16):
    """Full ScalSeq forward (Pallas kernels + thin JAX glue). Returns NCHW bf16."""
    p3, p4, p5 = x_list
    N, C0, H, W = p3.shape
    params = fold_params(raw, compute_dtype)
    C = params["w3"].shape[0]
    has_conv0 = "w0" in params
    vmem_limit, t_max = _tpu_budget()

    # p4/p5 branches: Conv+BN+SiLU at native resolution, THEN nearest-upsample
    # the C-channel outputs (pointwise ops commute with nearest upsample).
    # TODO(synk): the upsample itself is a JAX gather in the wrapper; a fully
    # in-kernel variant needs a per-scale (rows, W) BlockSpec/index_map.
    def branch(p, wk, bk):
        n, ci, h, w = p.shape
        q = conv1x1_bn_silu(p.reshape(n, ci, h * w).astype(compute_dtype),
                            params[wk], params[bk],
                            t_max=t_max, vmem_limit=vmem_limit,
                            out_dtype=compute_dtype)
        q = q.reshape(n, C, h, w)
        return nearest_upsample_nchw(q, H, W).reshape(n, C, H * W)

    q4u = branch(p4, "w1", "b1")
    q5u = branch(p5, "w2", "b2")
    p3f = p3.reshape(N, C0, H * W).astype(compute_dtype)

    out = scalseq_main_pallas(p3f, q4u, q5u, params, has_conv0=has_conv0,
                              t_max=t_max, vmem_limit=vmem_limit)
    return out.reshape(N, C, H, W)


# ----------------------------------------------------------------------------
# Pure-JAX reference implementing the PyTorch graph literally (eval-mode BN)
# ----------------------------------------------------------------------------
def scalseq_reference(x_list, raw):
    eps = raw["eps"]
    p3, p4, p5 = x_list
    H, W = p3.shape[2], p3.shape[3]

    def conv_bn_silu(x, p):
        y = jnp.einsum('nchw,oc->nohw', x, raw[p + "_w"])
        y = (raw[p + "_g"][None, :, None, None]
             * (y - raw[p + "_m"][None, :, None, None])
             / jnp.sqrt(raw[p + "_v"][None, :, None, None] + eps)
             + raw[p + "_b"][None, :, None, None])
        return y * jax.nn.sigmoid(y)

    q3 = conv_bn_silu(p3, "c0") if "c0_w" in raw else p3
    q4 = nearest_upsample_nchw(conv_bn_silu(p4, "c1"), H, W)
    q5 = nearest_upsample_nchw(conv_bn_silu(p5, "c2"), H, W)
    comb = jnp.stack([q3, q4, q5], axis=2)                           # (N,C,3,H,W)
    z = (jnp.einsum('ncdhw,oc->nodhw', comb, raw["c3_w"])
         + raw["c3_bias"][None, :, None, None, None])
    z = (raw["c3_g"][None, :, None, None, None]
         * (z - raw["c3_m"][None, :, None, None, None])
         / jnp.sqrt(raw["c3_v"][None, :, None, None, None] + eps)
         + raw["c3_b"][None, :, None, None, None])
    z = jnp.where(z > 0, z, 0.1 * z)
    return jnp.max(z, axis=2)                                        # pool(3,1,1)+squeeze


# ----------------------------------------------------------------------------
if __name__ == "__main__":
    key = jax.random.PRNGKey(0)
    inc = (8, 16, 32)      # inc[0] != channel -> conv0 path exists
    channel = 16
    N, H, W = 2, 8, 8

    k1, k2, k3, kp = jax.random.split(key, 4)
    p3 = jax.random.normal(k1, (N, inc[0], H, W), jnp.float32)
    p4 = jax.random.normal(k2, (N, inc[1], H // 2, W // 2), jnp.float32)
    p5 = jax.random.normal(k3, (N, inc[2], H // 4, W // 4), jnp.float32)

    raw = make_raw_params(kp, inc, channel)

    out = scalseq_forward([p3, p4, p5], raw)        # bf16 MXU path, f32 accumulate
    out = jax.block_until_ready(out)

    ref = scalseq_reference([p3, p4, p5], raw)      # f32 reference
    # bf16 weights/activations/output -> relaxed tolerance vs the f32 reference
    np.testing.assert_allclose(np.asarray(out.astype(jnp.float32)),
                               np.asarray(ref), rtol=3e-2, atol=3e-2)
    assert out.shape == (N, channel, H, W)
    print("KERNEL_OK")
</pallas_src>

<mosaic_0001>
module attributes {stable_mosaic.version = 11 : i64} {
  func.func @_branch_kernel(%arg0: i32, %arg1: i32, %arg2: memref<1x16x16xbf16, #tpu.memory_space<vmem>>, %arg3: memref<16x16xbf16, #tpu.memory_space<vmem>>, %arg4: memref<16x1xf32, #tpu.memory_space<vmem>>, %arg5: memref<1x16x16xbf16, #tpu.memory_space<vmem>>) attributes {dimension_semantics = [#tpu.dimension_semantics<parallel>, #tpu.dimension_semantics<parallel>], iteration_bounds = array<i64: 1, 2>, scalar_prefetch = 0 : i64, scratch_operands = 0 : i64, tpu.core_type = #tpu.core_type<tc>, window_params = [{transform_indices = @transform_0, window_bounds = array<i64: 1, 16, 16>}, {pipeline_mode = #tpu.pipeline_mode<synchronous>, transform_indices = @transform_1, window_bounds = array<i64: 16, 16>}, {pipeline_mode = #tpu.pipeline_mode<synchronous>, transform_indices = @transform_2, window_bounds = array<i64: 16, 1>}, {transform_indices = @transform_3, window_bounds = array<i64: 1, 16, 16>}]} {
    %c0 = arith.constant 0 : index
    %c0_0 = arith.constant 0 : index
    %0 = vector.load %arg3[%c0, %c0_0] : memref<16x16xbf16, #tpu.memory_space<vmem>>, vector<16x16xbf16>
    %c0_1 = arith.constant 0 : index
    %c0_2 = arith.constant 0 : index
    %c0_3 = arith.constant 0 : index
    %1 = vector.load %arg2[%c0_1, %c0_2, %c0_3] : memref<1x16x16xbf16, #tpu.memory_space<vmem>>, vector<1x16x16xbf16>
    %2 = vector.shape_cast %1 : vector<1x16x16xbf16> to vector<16x16xbf16>
    %cst = arith.constant dense<0.000000e+00> : vector<16x16xf32>
    %3 = tpu.matmul %0, %2, %cst {dimension_numbers = #tpu.dot_dimension_numbers<[1], [0], [0], [1], [0, 0, 1, 1], [], []>} : vector<16x16xbf16>, vector<16x16xbf16>, vector<16x16xf32> -> vector<16x16xf32>
    %c0_4 = arith.constant 0 : index
    %c0_5 = arith.constant 0 : index
    %4 = vector.load %arg4[%c0_4, %c0_5] : memref<16x1xf32, #tpu.memory_space<vmem>>, vector<16x1xf32>
    %5 = vector.broadcast %4 : vector<16x1xf32> to vector<16x16xf32>
    %6 = arith.addf %3, %5 : vector<16x16xf32>
    %7 = arith.negf %6 : vector<16x16xf32>
    %8 = math.exp %7 : vector<16x16xf32>
    %cst_6 = arith.constant 1.000000e+00 : f32
    %9 = vector.broadcast %cst_6 : f32 to vector<16x16xf32>
    %10 = arith.addf %9, %8 : vector<16x16xf32>
    %11 = arith.divf %9, %10 : vector<16x16xf32>
    %12 = arith.mulf %6, %11 : vector<16x16xf32>
    %13 = arith.truncf %12 : vector<16x16xf32> to vector<16x16xbf16>
    %c0_7 = arith.constant 0 : index
    %c0_8 = arith.constant 0 : index
    %c0_9 = arith.constant 0 : index
    %14 = vector.load %arg5[%c0_7, %c0_8, %c0_9] : memref<1x16x16xbf16, #tpu.memory_space<vmem>>, vector<1x16x16xbf16>
    %15 = vector.shape_cast %14 : vector<1x16x16xbf16> to vector<16x16xbf16>
    %16 = vector.shape_cast %13 : vector<16x16xbf16> to vector<1x16x16xbf16>
    tpu.vector_store %arg5[%c0_7, %c0_8, %c0_9], %16 {strides = array<i32>} : memref<1x16x16xbf16, #tpu.memory_space<vmem>>, vector<1x16x16xbf16>,
    return
  }
  func.func @transform_0(%arg0: i32, %arg1: i32) -> (i32, i32, i32) {
    %c0_i32 = arith.constant 0 : i32
    %c0_i32_0 = arith.constant 0 : i32
    return %arg1, %c0_i32, %arg0 : i32, i32, i32
  }
  func.func @transform_1(%arg0: i32, %arg1: i32) -> (i32, i32) {
    %c0_i32 = arith.constant 0 : i32
    %c0_i32_0 = arith.constant 0 : i32
    %c0_i32_1 = arith.constant 0 : i32
    return %c0_i32, %c0_i32_0 : i32, i32
  }
  func.func @transform_2(%arg0: i32, %arg1: i32) -> (i32, i32) {
    %c0_i32 = arith.constant 0 : i32
    %c0_i32_0 = arith.constant 0 : i32
    %c0_i32_1 = arith.constant 0 : i32
    return %c0_i32, %c0_i32_0 : i32, i32
  }
  func.func @transform_3(%arg0: i32, %arg1: i32) -> (i32, i32, i32) {
    %c0_i32 = arith.constant 0 : i32
    %c0_i32_0 = arith.constant 0 : i32
    return %arg1, %c0_i32, %arg0 : i32, i32, i32
  }
}

</mosaic_0001>

<llo_original>
// kernel: tpu_custom_call.1
$region0: #{tpu_custom_call.1}
  #allocation0 [shape = 'u32[]', space=smem, size = 0x4, offset = 0x4, fixed_abs, tag = 'smem constant byte address 0x4 - core index']
  #allocation1 [shape = 'u32[144,128]{1,0:T(1,128)}', space=vmem, size = 0x12000, scoped, tag = 'internal scratch']
  %s0 = inlined_call_operand.vmem [shape: bf16[2,16,16], index: 0, kind: input, shape index: {}]
  %s1 = inlined_call_operand.hbm [shape: bf16[16,16], index: 1, kind: input, shape index: {}]
  %s2 = inlined_call_operand.vmem [shape: f32[16,1], index: 2, kind: input, shape index: {}]
  %s3 = inlined_call_operand.hbm [shape: bf16[2,16,16], index: 3, kind: output, shape index: {}]
  %s4 = sld [smem:[#allocation0]]
  $region49: #{tpu_custom_call.1} parent=0
    _
  %s6 = ssub.s32 1, %s4
  %s7 = scalar_select 0, %s6, %s4
  $region1: #{tpu_custom_call.1} parent=0
    #allocation2 [shape = 'u8[4096]{0}', space=vmem, size = 0x1000, scoped, tag = 'input window, operand 1, single buffered']
    #allocation3 [shape = 's32[2]{0}', space=sflag, size = 0x8, scoped, tag = 'scoped memory for tpu_custom_call.1']
    #allocation4 [shape = 's32[2]{0}', space=sflag, size = 0x8, scoped, tag = 'scoped memory for tpu_custom_call.1']
    #allocation5 [shape = 'u8[8192]{0}', space=vmem, size = 0x2000, scoped, tag = 'output window, operand 0']
    %8 = vsyncpa [#allocation3], 0
    %9 = vsyncpa [#allocation4], 0
    %s10 = scalar_lea.sflag [#allocation4], 1
    %11 = vsyncpa %s10, 0
    loop: start=0, step=1, limit=4
    $region2: #{tpu_custom_call.1} parent=1 // loop_pre_header
      _
    $region3: #{tpu_custom_call.1} parent=1 // loop_header
      %s13 = sphi 0, %s17
      %p14 = scmp.ge.s32.totalorder %s13, 4
      %s20 = sphi 0, %s32
      %s21 = sphi 0, %s28
      %s22 = sphi 0, %s20
      %s23 = sphi 0, %s21
      %s24 = sphi 0, %s22
      %s25 = sphi 0, %s23
      %s37 = sphi 0, %s39
      %s40 = sphi 0, %s37
      %s41 = sphi 0, %s40
      %s57 = sphi 0, %s41
      %s61 = sphi 0, %s61
      %s63 = sphi 0, %s61
      %s64 = sphi 0, %s63
      %s78 = sphi 0, %s64
      %s82 = sphi 0, %s82
      %s84 = sphi 0, %s82
      %s85 = sphi 0, %s84
      %s99 = sphi 0, %s85
      %s107 = sphi 0, %s109
      %s110 = sphi 0, %s107
      %s111 = sphi 0, %s110
      %s127 = sphi 0, %s111
    $region4: #{tpu_custom_call.1} parent=1 // loop_header_branch
      %16 = sbr.rel (%p14) target = $region8
    $region5: #{tpu_custom_call.1} parent=1 // loop_body
      %s18 = ssub.s32 %s13, 1
      %s19 = ssub.s32 %s13, 2
      %s26 = sadd.s32 1, %s21
      %p27 = scmp.ge.s32.totalorder %s26, 2
      %s28 = scalar_select %p27, 0, %s26
      %s29 = sadd.s32 1, %s20
      %s30 = scalar_select %p27, %s29, %s20
      %p31 = scmp.ge.s32.totalorder %s30, 1
      %s32 = scalar_select %p31, 0, %s30
      %s33 = ssub.s32 %s21, %s28
      %s34 = ssub.s32 %s20, %s32
      %s35 = sor.u32 %s33, %s34
      %p36 = scmp.eq.s32.totalorder %s35, 0
      %s38 = sadd.s32 %s37, 1
      %s39 = scalar_select %p36, %s37, %s38
      %p42 = pneg %p36
      %p43 = scmp.eq.s32.totalorder %s13, 1
      %p44 = por %p42, %p43
      %p45 = scmp.ne.s32.totalorder %s37, %s40
      %p46 = scmp.eq.s32.totalorder %s13, 0
      %p47 = por %p45, %p46
      %p48 = scmp.ne.s32.totalorder %s37, %s40
      %p49 = scmp.eq.s32.totalorder %s18, 1
      %p50 = por %p48, %p49
      %p51 = scmp.ne.s32.totalorder %s40, %s41
      %p52 = scmp.eq.s32.totalorder %s18, 0
      %p53 = por %p51, %p52
      %p54 = scmp.ne.s32.totalorder %s40, %s41
      %p55 = scmp.eq.s32.totalorder %s19, 1
      %p56 = por %p54, %p55
      %p58 = scmp.ne.s32.totalorder %s41, %s57
      %p59 = scmp.eq.s32.totalorder %s19, 0
      %p60 = por %p58, %p59
      %s62 = sadd.s32 %s61, 1
      %p65 = scmp.eq.s32.totalorder %s13, 1
      %p66 = scmp.ne.s32.totalorder %s61, %s63
      %p67 = scmp.eq.s32.totalorder %s13, 0
      %p68 = por %p66, %p67
      %p69 = scmp.ne.s32.totalorder %s61, %s63
      %p70 = scmp.eq.s32.totalorder %s18, 1
      %p71 = por %p69, %p70
      %p72 = scmp.ne.s32.totalorder %s63, %s64
      %p73 = scmp.eq.s32.totalorder %s18, 0
      %p74 = por %p72, %p73
      %p75 = scmp.ne.s32.totalorder %s63, %s64
      %p76 = scmp.eq.s32.totalorder %s19, 1
      %p77 = por %p75, %p76
      %p79 = scmp.ne.s32.totalorder %s64, %s78
      %p80 = scmp.eq.s32.totalorder %s19, 0
      %p81 = por %p79, %p80
      %s83 = sadd.s32 %s82, 1
      %p86 = scmp.eq.s32.totalorder %s13, 1
      %p87 = scmp.ne.s32.totalorder %s82, %s84
      %p88 = scmp.eq.s32.totalorder %s13, 0
      %p89 = por %p87, %p88
      %p90 = scmp.ne.s32.totalorder %s82, %s84
      %p91 = scmp.eq.s32.totalorder %s18, 1
      %p92 = por %p90, %p91
      %p93 = scmp.ne.s32.totalorder %s84, %s85
      %p94 = scmp.eq.s32.totalorder %s18, 0
      %p95 = por %p93, %p94
      %p96 = scmp.ne.s32.totalorder %s84, %s85
      %p97 = scmp.eq.s32.totalorder %s19, 1
      %p98 = por %p96, %p97
      %p100 = scmp.ne.s32.totalorder %s85, %s99
      %p101 = scmp.eq.s32.totalorder %s19, 0
      %p102 = por %p100, %p101
      %s103 = ssub.s32 %s21, %s28
      %s104 = ssub.s32 %s20, %s32
      %s105 = sor.u32 %s103, %s104
      %p106 = scmp.eq.s32.totalorder %s105, 0
      %s108 = sadd.s32 %s107, 1
      %s109 = scalar_select %p106, %s107, %s108
      %p112 = pneg %p106
      %p113 = scmp.eq.s32.totalorder %s13, 1
      %p114 = por %p112, %p113
      %p115 = scmp.ne.s32.totalorder %s107, %s110
      %p116 = scmp.eq.s32.totalorder %s13, 0
      %p117 = por %p115, %p116
      %p118 = scmp.ne.s32.totalorder %s107, %s110
      %p119 = scmp.eq.s32.totalorder %s18, 1
      %p120 = por %p118, %p119
      %p121 = scmp.ne.s32.totalorder %s110, %s111
      %p122 = scmp.eq.s32.totalorder %s18, 0
      %p123 = por %p121, %p122
      %p124 = scmp.ne.s32.totalorder %s110, %s111
      %p125 = scmp.eq.s32.totalorder %s19, 1
      %p126 = por %p124, %p125
      %p128 = scmp.ne.s32.totalorder %s111, %s127
      %p129 = scmp.eq.s32.totalorder %s19, 0
      %p130 = por %p128, %p129
      %p131 = scmp.le.s32.totalorder 1, %s13
      %p132 = scmp.lt.s32.totalorder %s13, 3
      %p133 = pnand %p131, %p132
      %p134 = pneg %p133
      // Predicated region
      $region9: #{tpu_custom_call.1} parent=5 // pred_check
        _
      $region10: #{tpu_custom_call.1} parent=5 // pred_check_branch
        %136 = sbr.rel (%p133) target = $region12
      $region11: #{tpu_custom_call.1} parent=5 // pred_region
        %s137 = ssub.s32 %s13, 1
        // Predicated region
        $region13: #{tpu_custom_call.1} parent=11 // pred_check
          %p138 = pneg %p74
        $region14: #{tpu_custom_call.1} parent=11 // pred_check_branch
          %140 = sbr.rel (%p138) target = $region16
        $region15: #{tpu_custom_call.1} parent=11 // pred_region
          %s142 = ssub.s32 128, 128
          %143 = vsyncadd [#allocation3], %s142
          %s144 = sshll.u32 [#allocation2], 4
          %s145 = int_to_ptr.vmem [resolvable:$true] %s144
          %150 = dma.hbm_to_vmem [thread:$0]  %s1, 128, %s145, [#allocation3], 64, 64, 4
        $region16: #{tpu_custom_call.1} parent=11 // pred_fallthru
          _
        // Predicated region
        $region17: #{tpu_custom_call.1} parent=11 // pred_check
          %p151 = pneg %p95
        $region18: #{tpu_custom_call.1} parent=11 // pred_check_branch
          %153 = sbr.rel (%p151) target = $region20
        $region19: #{tpu_custom_call.1} parent=11 // pred_region
          _
        $region20: #{tpu_custom_call.1} parent=11 // pred_fallthru
          _
      $region12: #{tpu_custom_call.1} parent=5 // pred_fallthru
        _
      %p154 = scmp.lt.s32.totalorder %s13, 2
      // Predicated region
      $region21: #{tpu_custom_call.1} parent=5 // pred_check
        %p155 = pneg %p154
      $region22: #{tpu_custom_call.1} parent=5 // pred_check_branch
        %157 = sbr.rel (%p155) target = $region24
      $region23: #{tpu_custom_call.1} parent=5 // pred_region
        // Predicated region
        $region25: #{tpu_custom_call.1} parent=23 // pred_check
          %p158 = pneg %p47
        $region26: #{tpu_custom_call.1} parent=23 // pred_check_branch
          %160 = sbr.rel (%p158) target = $region28
        $region27: #{tpu_custom_call.1} parent=23 // pred_region
          %p161 = scmp.lt.s32.totalorder %s21, 1
          %s162 = scalar_select %p161, %s21, 1
          %p163 = scmp.lt.s32.totalorder %s20, 0
          %s164 = scalar_select %p163, %s20, 0
          %s165 = smul.addr %s162, 2
          %s166 = sadd.s32 %s164, %s165
          %s167 = smul.addr %s166, 4
          %s168 = scalar_lea.vmem %s0, %s167
        $region28: #{tpu_custom_call.1} parent=23 // pred_fallthru
          _
      $region24: #{tpu_custom_call.1} parent=5 // pred_fallthru
        _
      %p169 = scmp.le.s32.totalorder 1, %s13
      %p170 = scmp.lt.s32.totalorder %s13, 3
      %p171 = pnand %p169, %p170
      %p172 = pneg %p171
      // Predicated region
      $region29: #{tpu_custom_call.1} parent=5 // pred_check
        _
      $region30: #{tpu_custom_call.1} parent=5 // pred_check_branch
        %174 = sbr.rel (%p171) target = $region32
      $region31: #{tpu_custom_call.1} parent=5 // pred_region
        %s175 = ssub.s32 %s13, 1
        // Predicated region
        $region33: #{tpu_custom_call.1} parent=31 // pred_check
          %p176 = pneg %p74
        $region34: #{tpu_custom_call.1} parent=31 // pred_check_branch
          %178 = sbr.rel (%p176) target = $region36
        $region35: #{tpu_custom_call.1} parent=31 // pred_region
          %179 = dma.done [#allocation3], 128
        $region36: #{tpu_custom_call.1} parent=31 // pred_fallthru
          _
        %p180 = scmp.lt.s32.totalorder %s23, 1
        %s181 = scalar_select %p180, %s23, 1
        %p182 = scmp.lt.s32.totalorder %s22, 0
        %s183 = scalar_select %p182, %s22, 0
        %s184 = smul.addr %s181, 2
        %s185 = sadd.s32 %s183, %s184
        %s186 = smul.addr %s185, 4
        %s187 = scalar_lea.vmem %s0, %s186
        %p188 = pneg %p53
        %p189 = pneg %p50
        %p190 = pneg %p74
        %p191 = pneg %p71
        %p192 = pneg %p95
        %p193 = pneg %p92
        %p194 = pneg %p123
        %p195 = pneg %p120
        %s196 = sand.u32 %s110, 1
        %s197 = scalar_lea.sflag [#allocation4], %s196
        %s198 = sand.u32 %s110, 1
        %s199 = smul.addr %s198, 8
        %s200 = scalar_lea.vmem [#allocation5], %s199
        %p201 = scmp.lt.s32.totalorder %s23, 1
        %s202 = scalar_select %p201, %s23, 1
        %p203 = scmp.lt.s32.totalorder %s22, 0
        %s204 = scalar_select %p203, %s22, 0
        %s205 = smul.addr %s202, 2
        %s206 = sadd.s32 %s204, %s205
        %s207 = smul.addr %s206, 4
        %s208 = scalar_lea.vmem %s0, %s207
        %v210 = vld [vmem:[#allocation2] sm:$0xf]
        %v211 = vld [vmem:[#allocation2 + $0x4] sm:$0xf]
        %v212 = vld [vmem:[%s208] sm:$0xf]
        %v213 = vld [vmem:[%s208 + $0x4] sm:$0xf]
        %v214 = vld [vmem:[%s2] sm:$0xff]
        %v215 = vld [vmem:[%s2 + $0x8] sm:$0xff]
        %217 = vset.pattern.permute.xlu0 0
        %218 = vperm.xlu0 %217, %v214
        %v219 = vpop.permute.xlu0 %218
        %222 = vset.pattern.permute.xlu0 0
        %223 = vperm.xlu0 %222, %v215
        %v224 = vpop.permute.xlu0 %223
        %v228 = vunpack.c.l.b16 %v210
        %v229 = vunpack.c.l.b16 %v211
        %v230 = vpack.c.b16 %v229, %v228
        %v233 = vunpack.c.l.b16 %v212
        %v234 = vunpack.c.l.b16 %v213
        %v235 = vpack.c.b16 %v234, %v233
        %vm237 = vcmask 130048
        %v239 = vsel %vm237, %v230, 0
        %241 = vmatprep.subr.bf16.mxu0 0
        %242 = vmatpush1.bf16.msra.mxu0 0
        %243 = vmatprep.subr.bf16.mxu0 0
        %244 = vmatpush1.bf16.msra.mxu0 0
        %245 = vmatprep.subr.bf16.mxu0 0
        %246 = vmatpush1.bf16.msra.mxu0 0
        %247 = vmatprep.subr.bf16.mxu0 0
        %248 = vmatpush1.bf16.msra.mxu0 0
        %249 = vmatprep.subr.bf16.mxu0 0
        %250 = vmatpush1.bf16.msra.mxu0 0
        %251 = vmatprep.subr.bf16.mxu0 0
        %252 = vmatpush1.bf16.msra.mxu0 0
        %253 = vmatprep.subr.bf16.mxu0 0
        %254 = vmatpush1.bf16.msra.mxu0 0
        %255 = vmatprep.subr.bf16.mxu0 0
        %256 = vmatpush1.bf16.msra.mxu0 %v235
        %257 = vmatprep.subr.bf16.mxu0 0
        %258 = vmatpush2.bf16.msra.mxu0 0
        %259 = vmatprep.subr.bf16.mxu0 0
        %260 = vmatpush2.bf16.msra.mxu0 0
        %261 = vmatprep.subr.bf16.mxu0 0
        %262 = vmatpush2.bf16.msra.mxu0 0
        %263 = vmatprep.subr.bf16.mxu0 0
        %264 = vmatpush2.bf16.msra.mxu0 0
        %265 = vmatprep.subr.bf16.mxu0 0
        %266 = vmatpush2.bf16.msra.mxu0 0
        %267 = vmatprep.subr.bf16.mxu0 0
        %268 = vmatpush2.bf16.msra.mxu0 0
        %269 = vmatprep.subr.bf16.mxu0 0
        %270 = vmatpush2.bf16.msra.mxu0 0
        %271 = vmatprep.subr.bf16.mxu0 0
        %272 = vmatpush2.bf16.msra.mxu0 0
        %273 = vmatprep.mubr.bf16.mxu0 0
        %274 = vmatmul.mubr.bf16.gmra.mxu0 %v239
        %v275 = vpop.f32.mrf.mxu0
        %v276 = vadd.f32 %v219, %v275
        %v277 = vpop.f32.mrf.mxu0
        %v278 = vpop.f32.mrf.mxu0
        %v279 = vadd.f32 %v224, %v278
        %v280 = vpop.f32.mrf.mxu0
        %281 = vdwg.mxu0
        %v282 = vxor.u32 %v276, 2147483648
        %v283 = vxor.u32 %v279, 2147483648
        %v284 = vmul.f32 %v282, 1.442695
        %v285 = vpow.pop %v284
        %v286 = vmul.f32 %v283, 1.442695
        %v287 = vpow.pop %v286
        %v288 = vadd.f32 %v285, 1.0
        %v289 = vadd.f32 %v287, 1.0
        %v290 = vrcp.pop %v288
        %v291 = vmul.f32 1.0, %v290
        %v292 = vrcp.pop %v289
        %v293 = vmul.f32 1.0, %v292
        %v294 = vmul.f32 %v276, %v291
        %v295 = vmul.f32 %v279, %v293
        %v296 = vpack.c.bf16 %v295, %v294
        %v298 = vunpack.c.l.b16 %v296
        %v299 = vunpack.c.h.b16 %v296
        %v300 = vpack.c.b16 %v298, %v298
        %v301 = vpack.c.b16 %v299, %v299
        %vm304 = vcmask 125952
        %305 = vst.msk [vmem:[%s200] sm:$0xf] %vm304, %v300
        %306 = vst.msk [vmem:[%s200 + $0x4] sm:$0xf] %vm304, %v301
        %s307 = sand.u32 %s110, 1
        %s308 = scalar_lea.sflag [#allocation4], %s307
        %s309 = sand.u32 %s110, 1
        %s310 = smul.addr %s309, 8
        %s311 = scalar_lea.vmem [#allocation5], %s310
        // Predicated region
        $region37: #{tpu_custom_call.1} parent=31 // pred_check
          %p312 = pneg %p120
        $region38: #{tpu_custom_call.1} parent=31 // pred_check_branch
          %314 = sbr.rel (%p312) target = $region40
        $region39: #{tpu_custom_call.1} parent=31 // pred_region
          %s316 = ssub.s32 128, 128
          %317 = vsyncadd %s308, %s316
          %s318 = smul.addr %s23, 2
          %s319 = sadd.s32 %s22, %s318
          %s320 = smul.addr %s319, 64
          %s321 = scalar_lea.hbm %s3, %s320
          %s322 = sshll.u32 %s311, 4
          %s323 = int_to_ptr.vmem [resolvable:$true] %s322
          %328 = dma.vmem_to_hbm [thread:$0]  %s323, 128, %s321, %s308, 64, 64, 4
        $region40: #{tpu_custom_call.1} parent=31 // pred_fallthru
          _
      $region32: #{tpu_custom_call.1} parent=5 // pred_fallthru
        _
      %p329 = scmp.le.s32.totalorder 2, %s13
      // Predicated region
      $region41: #{tpu_custom_call.1} parent=5 // pred_check
        %p330 = pneg %p329
      $region42: #{tpu_custom_call.1} parent=5 // pred_check_branch
        %332 = sbr.rel (%p330) target = $region44
      $region43: #{tpu_custom_call.1} parent=5 // pred_region
        %s333 = ssub.s32 %s13, 2
        // Predicated region
        $region45: #{tpu_custom_call.1} parent=43 // pred_check
          %p334 = pneg %p126
        $region46: #{tpu_custom_call.1} parent=43 // pred_check_branch
          %336 = sbr.rel (%p334) target = $region48
        $region47: #{tpu_custom_call.1} parent=43 // pred_region
          %s337 = sand.u32 %s111, 1
          %s338 = scalar_lea.sflag [#allocation4], %s337
          %s339 = sand.u32 %s111, 1
          %s340 = smul.addr %s339, 8
          %s341 = scalar_lea.vmem [#allocation5], %s340
          %342 = dma.done %s338, 128
        $region48: #{tpu_custom_call.1} parent=43 // pred_fallthru
          _
      $region44: #{tpu_custom_call.1} parent=5 // pred_fallthru
        _
    $region6: #{tpu_custom_call.1} parent=1 // loop_footer
      %s17 = sadd.s32 1, %s13
    $region7: #{tpu_custom_call.1} parent=1 // loop_footer_branch
      %12 = sbr.rel target = $region3
    $region8: #{tpu_custom_call.1} parent=1 // loop_exit
      _
    %343 = vsyncpa [#allocation3], 1
    %s344 = scalar_lea.sflag [#allocation3], 1
    %345 = vsyncpa %s344, 1
    %346 = vsyncpa [#allocation4], 1
    %s347 = scalar_lea.sflag [#allocation4], 1
    %348 = vsyncpa %s347, 1

</llo_original>
